<compile_context>
chip_gen: v7x
topology: tpu7x:2x2x1
jax: 0.10.0
libtpu: 0.0.40
codegen_flags: <defaults>
</compile_context>

<pallas_src>
import jax
import jax.numpy as jnp
from jax.experimental import pallas as pl
from jax.experimental.pallas import tpu as pltpu

WIDTH = 128            # merged / padded feature width (lane-dense)
ONE_LANE = WIDTH - 1   # constant-1 carrier lane (bias folding)
N_LAYERS = 6           # layer0 | layer1 | layer2 | layer3 | (attn∘combined1) | combined2


# ------------------------------- the kernel --------------------------------

def icu_kernel(x_ref, w_ref, out_ref):
    # x_ref: (tile_B, 128) bf16, lane 127 == 1.0 (bias carrier).
    # w_ref: (6, 128, 128) bf16, biases baked into row 127 of each matrix.
    h = x_ref[...]
    for k in range(N_LAYERS - 1):
        a = jnp.dot(h, w_ref[k], preferred_element_type=jnp.float32)
        h = jnp.maximum(a, 0.0).astype(jnp.bfloat16)      # ReLU in f32, cast for MXU
    out_ref[...] = jnp.dot(h, w_ref[N_LAYERS - 1], preferred_element_type=jnp.float32)


# ----------------------------- input packing --------------------------------

def pack_inputs(clinical, img):
    """Pack clinical|img into one lane-dense (B_pad, 128) bf16 input with the
    constant-1 carrier in lane 127.  Returns (x, tile_b)."""
    B, dc = clinical.shape
    di = img.shape[1]
    assert dc + di <= ONE_LANE
    if B <= 256:
        tile_b = max(16, -(-B // 16) * 16)      # one grid step at small batch
    else:
        tile_b = 256                            # >=256 rows/step amortizes overhead
    b_pad = -(-B // tile_b) * tile_b
    x = jnp.zeros((b_pad, WIDTH), jnp.float32)
    x = x.at[:B, :dc].set(clinical)
    x = x.at[:B, dc:dc + di].set(img)
    x = x.at[:, ONE_LANE].set(1.0)
    return x.astype(jnp.bfloat16), tile_b


# -------------------------------- wrapper ----------------------------------

def icu_forward(clinical, img, w_slab):
    """w_slab = fold_params(...): (6, 128, 128) bf16."""
    B = clinical.shape[0]
    x, tile_b = pack_inputs(clinical, img)
    b_pad = x.shape[0]
    grid = (b_pad // tile_b,)

    flops = 2 * b_pad * N_LAYERS * WIDTH * WIDTH
    bytes_accessed = 2 * x.size + 2 * w_slab.size + 4 * b_pad * WIDTH

    out = pl.pallas_call(
        icu_kernel,
        out_shape=jax.ShapeDtypeStruct((b_pad, WIDTH), jnp.float32),
        grid_spec=pltpu.PrefetchScalarGridSpec(
            num_scalar_prefetch=0,
            grid=grid,
            in_specs=[
                pl.BlockSpec((tile_b, WIDTH), lambda i: (i, 0)),
                # constant index_map -> weight slab fetched once, stays VMEM-resident
                pl.BlockSpec((N_LAYERS, WIDTH, WIDTH), lambda i: (0, 0, 0)),
            ],
            out_specs=pl.BlockSpec((tile_b, WIDTH), lambda i: (i, 0)),
        ),
        compiler_params=pltpu.CompilerParams(dimension_semantics=("parallel",)),
        cost_estimate=pl.CostEstimate(flops=flops, transcendentals=0,
                                      bytes_accessed=bytes_accessed),
    )(x, w_slab)
    # TODO(synk): in a serving loop, prefetch w_slab cross-call (P10: start the DMA in
    # the previous pallas_call and return the VMEM ref + semaphore) so the weight fetch
    # and launch overhead are not paid per micro-batch.
    return out[:B, :1]


# --------------------------- host-side param folding -----------------------

def _block_diag(a, b):
    ra, ca = a.shape
    rb, cb = b.shape
    out = jnp.zeros((ra + rb, ca + cb), jnp.float32)
    out = out.at[:ra, :ca].set(a)
    out = out.at[ra:, ca:].set(b)
    return out


def _embed(block, bias, carry):
    """Place `block` at [0:r, 0:c], bias at row ONE_LANE, optional carrier 1 at
    (ONE_LANE, ONE_LANE)."""
    r, c = block.shape
    assert r <= ONE_LANE and c <= ONE_LANE
    W = jnp.zeros((WIDTH, WIDTH), jnp.float32)
    W = W.at[:r, :c].set(block)
    W = W.at[ONE_LANE, :bias.shape[0]].set(bias)
    if carry:
        W = W.at[ONE_LANE, ONE_LANE].set(1.0)
    return W


def fold_params(params, clinical_input_dim, img_input_dim, hidden_dims):
    (cw0, cb0, cw1, cb1, cw2, cb2, cw3, cb3,
     iw0, ib0, iw1, ib1, iw2, ib2, iw3, ib3,
     cav_w, cav_b, cao_w, cao_b,
     iav_w, iav_b, iao_w, iao_b,
     fw0, fb0, fw1, fb1) = params
    h0, h1, h2, h3, h4 = hidden_dims

    def cat_b(cb, ib):
        return jnp.concatenate([cb.reshape(-1), ib.reshape(-1)])

    layers = []
    # Layer 0 of both branches (clinical -> lanes [0:h0], img -> lanes [h0:2h0]).
    layers.append((_block_diag(cw0, iw0), cat_b(cb0, ib0), True))
    # MLP layers 1..3, block-diagonal over the two branches.
    layers.append((_block_diag(cw1, iw1), cat_b(cb1, ib1), True))
    layers.append((_block_diag(cw2, iw2), cat_b(cb2, ib2), True))
    layers.append((_block_diag(cw3, iw3), cat_b(cb3, ib3), True))
    # Seq-len-1 MHA (== out_proj(V)) folded into combined_net layer 1 (exact: no
    # nonlinearity between the attention output projection and fw0).
    c_att_w = cav_w @ cao_w
    c_att_b = (cav_b @ cao_w + cao_b).reshape(-1)
    i_att_w = iav_w @ iao_w
    i_att_b = (iav_b @ iao_w + iao_b).reshape(-1)
    att_w = _block_diag(c_att_w, i_att_w)            # (2*h3, 2*h3)
    att_b = jnp.concatenate([c_att_b, i_att_b])
    w45 = att_w @ fw0                                # (2*h3, h4)
    b45 = att_b @ fw0 + fb0.reshape(-1)
    layers.append((w45, b45, True))
    # combined_net layer 2: real logit in output lane 0, no carrier needed after.
    layers.append((fw1, fb1.reshape(-1), False))

    slab = jnp.stack([_embed(w, b, carry) for (w, b, carry) in layers])  # (6,128,128)
    return slab.astype(jnp.bfloat16)


# --------------------------- deterministic params --------------------------

def _init_linear(key, din, dout):
    kw, kb = jax.random.split(key)
    w = jax.random.normal(kw, (din, dout), jnp.float32) / jnp.sqrt(jnp.float32(din))
    b = 0.01 * jax.random.normal(kb, (1, dout), jnp.float32)
    return w, b


def _init_mha(key, embed_dim):
    # PyTorch stores in_proj_weight of shape (3E, E); only the V slice matters
    # (Q/K cancel for seq_len == 1) plus the output projection.
    k_in_w, k_in_b, k_out = jax.random.split(key, 3)
    in_proj_w = jax.random.normal(k_in_w, (3 * embed_dim, embed_dim), jnp.float32) \
        / jnp.sqrt(jnp.float32(embed_dim))
    in_proj_b = 0.01 * jax.random.normal(k_in_b, (3 * embed_dim,), jnp.float32)
    wv = in_proj_w[2 * embed_dim:].T                  # (E, E), used as x @ Wv
    bv = in_proj_b[2 * embed_dim:].reshape(1, embed_dim)
    wo, bo = _init_linear(k_out, embed_dim, embed_dim)
    return wv, bv, wo, bo


def make_params(key, clinical_input_dim, img_input_dim, hidden_dims):
    keys = jax.random.split(key, 16)
    h0, h1, h2, h3, h4 = hidden_dims

    clin_dims = [(clinical_input_dim, h0), (h0, h1), (h1, h2), (h2, h3)]
    img_dims = [(img_input_dim, h0), (h0, h1), (h1, h2), (h2, h3)]

    params = []
    for i, (din, dout) in enumerate(clin_dims):
        params.extend(_init_linear(keys[i], din, dout))
    for i, (din, dout) in enumerate(img_dims):
        params.extend(_init_linear(keys[4 + i], din, dout))

    params.extend(_init_mha(keys[8], h3))              # clinical attention
    params.extend(_init_mha(keys[9], h3))              # img attention

    params.extend(_init_linear(keys[10], 2 * h3, h4))  # combined layer 1
    params.extend(_init_linear(keys[11], h4, 1))       # combined layer 2
    return tuple(params)


# ------------------------------ pure-JAX refs --------------------------------

def reference(clinical, img, params):
    """Original module math in f32 (eval-mode dropout == identity)."""
    (cw0, cb0, cw1, cb1, cw2, cb2, cw3, cb3,
     iw0, ib0, iw1, ib1, iw2, ib2, iw3, ib3,
     cav_w, cav_b, cao_w, cao_b,
     iav_w, iav_b, iao_w, iao_b,
     fw0, fb0, fw1, fb1) = params

    def mlp(x, wbs):
        for w, b in wbs:
            x = jnp.maximum(x @ w + b, 0.0)
        return x

    c = mlp(clinical, [(cw0, cb0), (cw1, cb1), (cw2, cb2), (cw3, cb3)])
    g = mlp(img, [(iw0, ib0), (iw1, ib1), (iw2, ib2), (iw3, ib3)])
    c = (c @ cav_w + cav_b) @ cao_w + cao_b            # seq-1 MHA == out_proj(V)
    g = (g @ iav_w + iav_b) @ iao_w + iao_b
    fused = jnp.concatenate([c, g], axis=1)
    h = jnp.maximum(fused @ fw0 + fb0, 0.0)
    return h @ fw1 + fb1


def folded_reference(x_bf16, w_slab):
    """Exactly the kernel math, in pure JAX (tight correctness check)."""
    h = x_bf16
    for k in range(N_LAYERS - 1):
        a = jnp.dot(h, w_slab[k], preferred_element_type=jnp.float32)
        h = jnp.maximum(a, 0.0).astype(jnp.bfloat16)
    return jnp.dot(h, w_slab[N_LAYERS - 1], preferred_element_type=jnp.float32)


# ---------------------------------- main ------------------------------------

if __name__ == "__main__":
    key = jax.random.PRNGKey(0)
    k_clin, k_img, k_params = jax.random.split(key, 3)

    B = 8
    clinical_input_dim = 16
    img_input_dim = 16
    hidden_dims = (32, 32, 32, 32, 32)

    clinical = jax.random.normal(k_clin, (B, clinical_input_dim), jnp.float32)
    img = jax.random.normal(k_img, (B, img_input_dim), jnp.float32)
    params = make_params(k_params, clinical_input_dim, img_input_dim, hidden_dims)
    w_slab = fold_params(params, clinical_input_dim, img_input_dim, hidden_dims)

    out = icu_forward(clinical, img, w_slab)
    out = jax.block_until_ready(out)
    assert out.shape == (B, 1), out.shape

    # (a) tight check: kernel vs the identical folded-bf16 math in pure JAX.
    x_packed, _ = pack_inputs(clinical, img)
    ref_folded = folded_reference(x_packed, w_slab)[:B, :1]
    assert jnp.allclose(out, ref_folded, atol=2e-3, rtol=2e-3), \
        "kernel mismatch vs folded pure-JAX reference"

    # (b) end-to-end check vs the original f32 module math (bf16 quantization slack).
    ref_f32 = reference(clinical, img, params)
    assert jnp.allclose(out, ref_f32, atol=1e-1, rtol=1e-1), \
        "kernel mismatch vs original f32 reference"

    print("KERNEL_OK")
</pallas_src>

<mosaic_0001>
module attributes {stable_mosaic.version = 11 : i64} {
  func.func @icu_kernel(%arg0: i32, %arg1: memref<16x128xbf16, #tpu.memory_space<vmem>>, %arg2: memref<6x128x128xbf16, #tpu.memory_space<vmem>>, %arg3: memref<16x128xf32, #tpu.memory_space<vmem>>) attributes {dimension_semantics = [#tpu.dimension_semantics<parallel>], iteration_bounds = array<i64: 1>, scalar_prefetch = 0 : i64, scratch_operands = 0 : i64, tpu.core_type = #tpu.core_type<tc>, window_params = [{transform_indices = @transform_0, window_bounds = array<i64: 16, 128>}, {pipeline_mode = #tpu.pipeline_mode<synchronous>, transform_indices = @transform_1, window_bounds = array<i64: 6, 128, 128>}, {transform_indices = @transform_2, window_bounds = array<i64: 16, 128>}]} {
    %c0 = arith.constant 0 : index
    %c0_0 = arith.constant 0 : index
    %0 = vector.load %arg1[%c0, %c0_0] : memref<16x128xbf16, #tpu.memory_space<vmem>>, vector<16x128xbf16>
    %c0_1 = arith.constant 0 : index
    %c0_2 = arith.constant 0 : index
    %c0_3 = arith.constant 0 : index
    %1 = vector.load %arg2[%c0_1, %c0_2, %c0_3] : memref<6x128x128xbf16, #tpu.memory_space<vmem>>, vector<1x128x128xbf16>
    %2 = vector.shape_cast %1 : vector<1x128x128xbf16> to vector<128x128xbf16>
    %cst = arith.constant dense<0.000000e+00> : vector<16x128xf32>
    %3 = tpu.matmul %0, %2, %cst {dimension_numbers = #tpu.dot_dimension_numbers<[1], [0], [0], [1], [0, 0, 1, 1], [], []>} : vector<16x128xbf16>, vector<128x128xbf16>, vector<16x128xf32> -> vector<16x128xf32>
    %cst_4 = arith.constant 0.000000e+00 : f32
    %4 = vector.broadcast %cst_4 : f32 to vector<16x128xf32>
    %5 = arith.maximumf %3, %4 : vector<16x128xf32>
    %6 = arith.truncf %5 : vector<16x128xf32> to vector<16x128xbf16>
    %c1 = arith.constant 1 : index
    %c0_5 = arith.constant 0 : index
    %c0_6 = arith.constant 0 : index
    %7 = vector.load %arg2[%c1, %c0_5, %c0_6] : memref<6x128x128xbf16, #tpu.memory_space<vmem>>, vector<1x128x128xbf16>
    %8 = vector.shape_cast %7 : vector<1x128x128xbf16> to vector<128x128xbf16>
    %cst_7 = arith.constant dense<0.000000e+00> : vector<16x128xf32>
    %9 = tpu.matmul %6, %8, %cst_7 {dimension_numbers = #tpu.dot_dimension_numbers<[1], [0], [0], [1], [0, 0, 1, 1], [], []>} : vector<16x128xbf16>, vector<128x128xbf16>, vector<16x128xf32> -> vector<16x128xf32>
    %cst_8 = arith.constant 0.000000e+00 : f32
    %10 = vector.broadcast %cst_8 : f32 to vector<16x128xf32>
    %11 = arith.maximumf %9, %10 : vector<16x128xf32>
    %12 = arith.truncf %11 : vector<16x128xf32> to vector<16x128xbf16>
    %c2 = arith.constant 2 : index
    %c0_9 = arith.constant 0 : index
    %c0_10 = arith.constant 0 : index
    %13 = vector.load %arg2[%c2, %c0_9, %c0_10] : memref<6x128x128xbf16, #tpu.memory_space<vmem>>, vector<1x128x128xbf16>
    %14 = vector.shape_cast %13 : vector<1x128x128xbf16> to vector<128x128xbf16>
    %cst_11 = arith.constant dense<0.000000e+00> : vector<16x128xf32>
    %15 = tpu.matmul %12, %14, %cst_11 {dimension_numbers = #tpu.dot_dimension_numbers<[1], [0], [0], [1], [0, 0, 1, 1], [], []>} : vector<16x128xbf16>, vector<128x128xbf16>, vector<16x128xf32> -> vector<16x128xf32>
    %cst_12 = arith.constant 0.000000e+00 : f32
    %16 = vector.broadcast %cst_12 : f32 to vector<16x128xf32>
    %17 = arith.maximumf %15, %16 : vector<16x128xf32>
    %18 = arith.truncf %17 : vector<16x128xf32> to vector<16x128xbf16>
    %c3 = arith.constant 3 : index
    %c0_13 = arith.constant 0 : index
    %c0_14 = arith.constant 0 : index
    %19 = vector.load %arg2[%c3, %c0_13, %c0_14] : memref<6x128x128xbf16, #tpu.memory_space<vmem>>, vector<1x128x128xbf16>
    %20 = vector.shape_cast %19 : vector<1x128x128xbf16> to vector<128x128xbf16>
    %cst_15 = arith.constant dense<0.000000e+00> : vector<16x128xf32>
    %21 = tpu.matmul %18, %20, %cst_15 {dimension_numbers = #tpu.dot_dimension_numbers<[1], [0], [0], [1], [0, 0, 1, 1], [], []>} : vector<16x128xbf16>, vector<128x128xbf16>, vector<16x128xf32> -> vector<16x128xf32>
    %cst_16 = arith.constant 0.000000e+00 : f32
    %22 = vector.broadcast %cst_16 : f32 to vector<16x128xf32>
    %23 = arith.maximumf %21, %22 : vector<16x128xf32>
    %24 = arith.truncf %23 : vector<16x128xf32> to vector<16x128xbf16>
    %c4 = arith.constant 4 : index
    %c0_17 = arith.constant 0 : index
    %c0_18 = arith.constant 0 : index
    %25 = vector.load %arg2[%c4, %c0_17, %c0_18] : memref<6x128x128xbf16, #tpu.memory_space<vmem>>, vector<1x128x128xbf16>
    %26 = vector.shape_cast %25 : vector<1x128x128xbf16> to vector<128x128xbf16>
    %cst_19 = arith.constant dense<0.000000e+00> : vector<16x128xf32>
    %27 = tpu.matmul %24, %26, %cst_19 {dimension_numbers = #tpu.dot_dimension_numbers<[1], [0], [0], [1], [0, 0, 1, 1], [], []>} : vector<16x128xbf16>, vector<128x128xbf16>, vector<16x128xf32> -> vector<16x128xf32>
    %cst_20 = arith.constant 0.000000e+00 : f32
    %28 = vector.broadcast %cst_20 : f32 to vector<16x128xf32>
    %29 = arith.maximumf %27, %28 : vector<16x128xf32>
    %30 = arith.truncf %29 : vector<16x128xf32> to vector<16x128xbf16>
    %c5 = arith.constant 5 : index
    %c0_21 = arith.constant 0 : index
    %c0_22 = arith.constant 0 : index
    %31 = vector.load %arg2[%c5, %c0_21, %c0_22] : memref<6x128x128xbf16, #tpu.memory_space<vmem>>, vector<1x128x128xbf16>
    %32 = vector.shape_cast %31 : vector<1x128x128xbf16> to vector<128x128xbf16>
    %cst_23 = arith.constant dense<0.000000e+00> : vector<16x128xf32>
    %33 = tpu.matmul %30, %32, %cst_23 {dimension_numbers = #tpu.dot_dimension_numbers<[1], [0], [0], [1], [0, 0, 1, 1], [], []>} : vector<16x128xbf16>, vector<128x128xbf16>, vector<16x128xf32> -> vector<16x128xf32>
    %c0_24 = arith.constant 0 : index
    %c0_25 = arith.constant 0 : index
    %34 = vector.load %arg3[%c0_24, %c0_25] : memref<16x128xf32, #tpu.memory_space<vmem>>, vector<16x128xf32>
    tpu.vector_store %arg3[%c0_24, %c0_25], %33 {strides = array<i32>} : memref<16x128xf32, #tpu.memory_space<vmem>>, vector<16x128xf32>,
    return
  }
  func.func @transform_0(%arg0: i32) -> (i32, i32) {
    %c0_i32 = arith.constant 0 : i32
    %c0_i32_0 = arith.constant 0 : i32
    return %arg0, %c0_i32 : i32, i32
  }
  func.func @transform_1(%arg0: i32) -> (i32, i32, i32) {
    %c0_i32 = arith.constant 0 : i32
    %c0_i32_0 = arith.constant 0 : i32
    %c0_i32_1 = arith.constant 0 : i32
    %c0_i32_2 = arith.constant 0 : i32
    return %c0_i32, %c0_i32_0, %c0_i32_1 : i32, i32, i32
  }
  func.func @transform_2(%arg0: i32) -> (i32, i32) {
    %c0_i32 = arith.constant 0 : i32
    %c0_i32_0 = arith.constant 0 : i32
    return %arg0, %c0_i32 : i32, i32
  }
}

</mosaic_0001>

<llo_original>
// kernel: tpu_custom_call.1
$region0: #{tpu_custom_call.1}
  #allocation0 [shape = 'u32[]', space=smem, size = 0x4, offset = 0x4, fixed_abs, tag = 'smem constant byte address 0x4 - core index']
  #allocation1 [shape = 'u32[144,128]{1,0:T(1,128)}', space=vmem, size = 0x12000, scoped, tag = 'internal scratch']
  %s0 = inlined_call_operand.hbm [shape: bf16[16,128], index: 0, kind: input, shape index: {}]
  %s1 = inlined_call_operand.hbm [shape: bf16[6,128,128], index: 1, kind: input, shape index: {}]
  %s2 = inlined_call_operand.hbm [shape: f32[16,128], index: 2, kind: output, shape index: {}]
  %s3 = sld [smem:[#allocation0]]
  $region26: #{tpu_custom_call.1} parent=0
    _
  %s5 = ssub.s32 1, %s3
  %s6 = scalar_select 0, %s5, %s3
  $region1: #{tpu_custom_call.1} parent=0
    #allocation2 [shape = 'u8[4096]{0}', space=vmem, size = 0x1000, scoped, tag = 'input window, operand 0, single buffered']
    #allocation3 [shape = 's32[1]{0}', space=sflag, size = 0x4, scoped, tag = 'scoped memory for tpu_custom_call.1']
    #allocation4 [shape = 's32[1]{0}', space=sflag, size = 0x4, scoped, tag = 'scoped memory for tpu_custom_call.1']
    #allocation5 [shape = 'u8[196608]{0}', space=vmem, size = 0x30000, scoped, tag = 'input window, operand 1, single buffered']
    #allocation6 [shape = 's32[1]{0}', space=sflag, size = 0x4, scoped, tag = 'scoped memory for tpu_custom_call.1']
    #allocation7 [shape = 'u8[8192]{0}', space=vmem, size = 0x2000, scoped, tag = 'output window, operand 0, single buffered']
    %7 = vsyncpa [#allocation3], 0
    %8 = vsyncpa [#allocation6], 0
    %9 = vsyncpa [#allocation4], 0
    // Predicated region
    $region2: #{tpu_custom_call.1} parent=1 // pred_check
      _
    $region3: #{tpu_custom_call.1} parent=1 // pred_check_branch
      %11 = sbr.rel (0) target = $region5
    $region4: #{tpu_custom_call.1} parent=1 // pred_region
      %s13 = ssub.s32 128, 128
      %14 = vsyncadd [#allocation3], %s13
      %s15 = sshll.u32 [#allocation2], 4
      %s16 = int_to_ptr.vmem [resolvable:$true] %s15
      %21 = dma.hbm_to_vmem [thread:$0]  %s0, 128, %s16, [#allocation3], 64, 64, 4
    $region5: #{tpu_custom_call.1} parent=1 // pred_fallthru
      _
    // Predicated region
    $region6: #{tpu_custom_call.1} parent=1 // pred_check
      _
    $region7: #{tpu_custom_call.1} parent=1 // pred_check_branch
      %23 = sbr.rel (0) target = $region9
    $region8: #{tpu_custom_call.1} parent=1 // pred_region
      %s25 = ssub.s32 6144, 6144
      %26 = vsyncadd [#allocation6], %s25
      %s27 = sshll.u32 [#allocation5], 4
      %s28 = int_to_ptr.vmem [resolvable:$true] %s27
      %33 = dma.hbm_to_vmem [thread:$0]  %s1, 6144, %s28, [#allocation6], 64, 64, 4
    $region9: #{tpu_custom_call.1} parent=1 // pred_fallthru
      _
    // Predicated region
    $region10: #{tpu_custom_call.1} parent=1 // pred_check
      _
    $region11: #{tpu_custom_call.1} parent=1 // pred_check_branch
      %35 = sbr.rel (0) target = $region13
    $region12: #{tpu_custom_call.1} parent=1 // pred_region
      %36 = dma.done [#allocation3], 128
    $region13: #{tpu_custom_call.1} parent=1 // pred_fallthru
      _
    // Predicated region
    $region14: #{tpu_custom_call.1} parent=1 // pred_check
      _
    $region15: #{tpu_custom_call.1} parent=1 // pred_check_branch
      %38 = sbr.rel (0) target = $region17
    $region16: #{tpu_custom_call.1} parent=1 // pred_region
      %39 = dma.done [#allocation6], 6144
    $region17: #{tpu_custom_call.1} parent=1 // pred_fallthru
      _
    %v41 = vld [vmem:[#allocation2] sm:$0xf]
    %v42 = vld [vmem:[#allocation2 + $0x4] sm:$0xf]
    %v43 = vld [vmem:[#allocation5] sm:$0xf]
    %v44 = vld [vmem:[#allocation5 + $0x4] sm:$0xf]
    %v45 = vld [vmem:[#allocation5 + $0x8] sm:$0xf]
    %v46 = vld [vmem:[#allocation5 + $0xc] sm:$0xf]
    %v47 = vld [vmem:[#allocation5 + $0x10] sm:$0xf]
    %v48 = vld [vmem:[#allocation5 + $0x14] sm:$0xf]
    %v49 = vld [vmem:[#allocation5 + $0x18] sm:$0xf]
    %v50 = vld [vmem:[#allocation5 + $0x1c] sm:$0xf]
    %v51 = vld [vmem:[#allocation5 + $0x20] sm:$0xf]
    %v52 = vld [vmem:[#allocation5 + $0x24] sm:$0xf]
    %v53 = vld [vmem:[#allocation5 + $0x28] sm:$0xf]
    %v54 = vld [vmem:[#allocation5 + $0x2c] sm:$0xf]
    %v55 = vld [vmem:[#allocation5 + $0x30] sm:$0xf]
    %v56 = vld [vmem:[#allocation5 + $0x34] sm:$0xf]
    %v57 = vld [vmem:[#allocation5 + $0x38] sm:$0xf]
    %v58 = vld [vmem:[#allocation5 + $0x3c] sm:$0xf]
    %v61 = vunpack.c.l.b16 %v41
    %v62 = vunpack.c.l.b16 %v42
    %v63 = vpack.c.b16 %v62, %v61
    %v81 = vunpack.c.l.b16 %v43
    %v82 = vunpack.c.l.b16 %v44
    %v83 = vunpack.c.l.b16 %v45
    %v84 = vunpack.c.l.b16 %v46
    %v85 = vunpack.c.l.b16 %v47
    %v86 = vunpack.c.l.b16 %v48
    %v87 = vunpack.c.l.b16 %v49
    %v88 = vunpack.c.l.b16 %v50
    %v89 = vunpack.c.l.b16 %v51
    %v90 = vunpack.c.l.b16 %v52
    %v91 = vunpack.c.l.b16 %v53
    %v92 = vunpack.c.l.b16 %v54
    %v93 = vunpack.c.l.b16 %v55
    %v94 = vunpack.c.l.b16 %v56
    %v95 = vunpack.c.l.b16 %v57
    %v96 = vunpack.c.l.b16 %v58
    %v97 = vpack.c.b16 %v82, %v81
    %v98 = vpack.c.b16 %v84, %v83
    %v99 = vpack.c.b16 %v86, %v85
    %v100 = vpack.c.b16 %v88, %v87
    %v101 = vpack.c.b16 %v90, %v89
    %v102 = vpack.c.b16 %v92, %v91
    %v103 = vpack.c.b16 %v94, %v93
    %v104 = vpack.c.b16 %v96, %v95
    %113 = vmatprep.subr.bf16.mxu0 0
    %114 = vmatpush1.bf16.msra.mxu0 %v97
    %115 = vmatprep.subr.bf16.mxu0 0
    %116 = vmatpush1.bf16.msra.mxu0 %v98
    %117 = vmatprep.subr.bf16.mxu0 0
    %118 = vmatpush1.bf16.msra.mxu0 %v99
    %119 = vmatprep.subr.bf16.mxu0 0
    %120 = vmatpush1.bf16.msra.mxu0 %v100
    %121 = vmatprep.subr.bf16.mxu0 0
    %122 = vmatpush1.bf16.msra.mxu0 %v101
    %123 = vmatprep.subr.bf16.mxu0 0
    %124 = vmatpush1.bf16.msra.mxu0 %v102
    %125 = vmatprep.subr.bf16.mxu0 0
    %126 = vmatpush1.bf16.msra.mxu0 %v103
    %127 = vmatprep.subr.bf16.mxu0 0
    %128 = vmatpush1.bf16.msra.mxu0 %v104
    %129 = vmatprep.subr.bf16.mxu0 0
    %130 = vmatpush1.bf16.msra.mxu0 0
    %131 = vmatprep.subr.bf16.mxu0 0
    %132 = vmatpush1.bf16.msra.mxu0 0
    %133 = vmatprep.subr.bf16.mxu0 0
    %134 = vmatpush1.bf16.msra.mxu0 0
    %135 = vmatprep.subr.bf16.mxu0 0
    %136 = vmatpush1.bf16.msra.mxu0 0
    %137 = vmatprep.subr.bf16.mxu0 0
    %138 = vmatpush1.bf16.msra.mxu0 0
    %139 = vmatprep.subr.bf16.mxu0 0
    %140 = vmatpush1.bf16.msra.mxu0 0
    %141 = vmatprep.subr.bf16.mxu0 0
    %142 = vmatpush1.bf16.msra.mxu0 0
    %143 = vmatprep.subr.bf16.mxu0 0
    %144 = vmatpush1.bf16.msra.mxu0 0
    %145 = vmatprep.mubr.bf16.mxu0 0
    %146 = vmatmul.mubr.bf16.gmra.mrb[0].mxu0 %v63
    %v147 = vpop.f32.mrb[0].mxu0
    %v148 = vadd.f32 0.0, %v147
    %v149 = vpop.f32.mrb[0].mxu0
    %v150 = vpop.f32.mrb[0].mxu0
    %v151 = vadd.f32 0.0, %v150
    %v152 = vpop.f32.mrb[0].mxu0
    %153 = vdwg.mxu0
    %v154 = vmax.f32 %v148, 0.0
    %v155 = vmax.f32 %v151, 0.0
    %v156 = vpack.c.bf16 %v155, %v154
    %s157 = scalar_lea.vmem [#allocation5], 64
    %v158 = vld [vmem:[%s157] sm:$0xf]
    %v159 = vld [vmem:[%s157 + $0x4] sm:$0xf]
    %v160 = vld [vmem:[%s157 + $0x8] sm:$0xf]
    %v161 = vld [vmem:[%s157 + $0xc] sm:$0xf]
    %v162 = vld [vmem:[%s157 + $0x10] sm:$0xf]
    %v163 = vld [vmem:[%s157 + $0x14] sm:$0xf]
    %v164 = vld [vmem:[%s157 + $0x18] sm:$0xf]
    %v165 = vld [vmem:[%s157 + $0x1c] sm:$0xf]
    %v166 = vld [vmem:[%s157 + $0x20] sm:$0xf]
    %v167 = vld [vmem:[%s157 + $0x24] sm:$0xf]
    %v168 = vld [vmem:[%s157 + $0x28] sm:$0xf]
    %v169 = vld [vmem:[%s157 + $0x2c] sm:$0xf]
    %v170 = vld [vmem:[%s157 + $0x30] sm:$0xf]
    %v171 = vld [vmem:[%s157 + $0x34] sm:$0xf]
    %v172 = vld [vmem:[%s157 + $0x38] sm:$0xf]
    %v173 = vld [vmem:[%s157 + $0x3c] sm:$0xf]
    %v190 = vunpack.c.l.b16 %v158
    %v191 = vunpack.c.l.b16 %v159
    %v192 = vunpack.c.l.b16 %v160
    %v193 = vunpack.c.l.b16 %v161
    %v194 = vunpack.c.l.b16 %v162
    %v195 = vunpack.c.l.b16 %v163
    %v196 = vunpack.c.l.b16 %v164
    %v197 = vunpack.c.l.b16 %v165
    %v198 = vunpack.c.l.b16 %v166
    %v199 = vunpack.c.l.b16 %v167
    %v200 = vunpack.c.l.b16 %v168
    %v201 = vunpack.c.l.b16 %v169
    %v202 = vunpack.c.l.b16 %v170
    %v203 = vunpack.c.l.b16 %v171
    %v204 = vunpack.c.l.b16 %v172
    %v205 = vunpack.c.l.b16 %v173
    %v206 = vpack.c.b16 %v191, %v190
    %v207 = vpack.c.b16 %v193, %v192
    %v208 = vpack.c.b16 %v195, %v194
    %v209 = vpack.c.b16 %v197, %v196
    %v210 = vpack.c.b16 %v199, %v198
    %v211 = vpack.c.b16 %v201, %v200
    %v212 = vpack.c.b16 %v203, %v202
    %v213 = vpack.c.b16 %v205, %v204
    %222 = vmatprep.subr.bf16.mxu0 0
    %223 = vmatpush1.bf16.msra.mxu0 %v206
    %224 = vmatprep.subr.bf16.mxu0 0
    %225 = vmatpush1.bf16.msra.mxu0 %v207
    %226 = vmatprep.subr.bf16.mxu0 0
    %227 = vmatpush1.bf16.msra.mxu0 %v208
    %228 = vmatprep.subr.bf16.mxu0 0
    %229 = vmatpush1.bf16.msra.mxu0 %v209
    %230 = vmatprep.subr.bf16.mxu0 0
    %231 = vmatpush1.bf16.msra.mxu0 %v210
    %232 = vmatprep.subr.bf16.mxu0 0
    %233 = vmatpush1.bf16.msra.mxu0 %v211
    %234 = vmatprep.subr.bf16.mxu0 0
    %235 = vmatpush1.bf16.msra.mxu0 %v212
    %236 = vmatprep.subr.bf16.mxu0 0
    %237 = vmatpush1.bf16.msra.mxu0 %v213
    %238 = vmatprep.subr.bf16.mxu0 0
    %239 = vmatpush1.bf16.msra.mxu0 0
    %240 = vmatprep.subr.bf16.mxu0 0
    %241 = vmatpush1.bf16.msra.mxu0 0
    %242 = vmatprep.subr.bf16.mxu0 0
    %243 = vmatpush1.bf16.msra.mxu0 0
    %244 = vmatprep.subr.bf16.mxu0 0
    %245 = vmatpush1.bf16.msra.mxu0 0
    %246 = vmatprep.subr.bf16.mxu0 0
    %247 = vmatpush1.bf16.msra.mxu0 0
    %248 = vmatprep.subr.bf16.mxu0 0
    %249 = vmatpush1.bf16.msra.mxu0 0
    %250 = vmatprep.subr.bf16.mxu0 0
    %251 = vmatpush1.bf16.msra.mxu0 0
    %252 = vmatprep.subr.bf16.mxu0 0
    %253 = vmatpush1.bf16.msra.mxu0 0
    %254 = vmatprep.mubr.bf16.mxu0 0
    %255 = vmatmul.mubr.bf16.gmra.mrb[0].mxu0 %v156
    %v256 = vpop.f32.mrb[0].mxu0
    %v257 = vadd.f32 0.0, %v256
    %v258 = vpop.f32.mrb[0].mxu0
    %v259 = vpop.f32.mrb[0].mxu0
    %v260 = vadd.f32 0.0, %v259
    %v261 = vpop.f32.mrb[0].mxu0
    %262 = vdwg.mxu0
    %v263 = vmax.f32 %v257, 0.0
    %v264 = vmax.f32 %v260, 0.0
    %v265 = vpack.c.bf16 %v264, %v263
    %s266 = scalar_lea.vmem [#allocation5], 128
    %v267 = vld [vmem:[%s266] sm:$0xf]
    %v268 = vld [vmem:[%s266 + $0x4] sm:$0xf]
    %v269 = vld [vmem:[%s266 + $0x8] sm:$0xf]
    %v270 = vld [vmem:[%s266 + $0xc] sm:$0xf]
    %v271 = vld [vmem:[%s266 + $0x10] sm:$0xf]
    %v272 = vld [vmem:[%s266 + $0x14] sm:$0xf]
    %v273 = vld [vmem:[%s266 + $0x18] sm:$0xf]
    %v274 = vld [vmem:[%s266 + $0x1c] sm:$0xf]
    %v275 = vld [vmem:[%s266 + $0x20] sm:$0xf]
    %v276 = vld [vmem:[%s266 + $0x24] sm:$0xf]
    %v277 = vld [vmem:[%s266 + $0x28] sm:$0xf]
    %v278 = vld [vmem:[%s266 + $0x2c] sm:$0xf]
    %v279 = vld [vmem:[%s266 + $0x30] sm:$0xf]
    %v280 = vld [vmem:[%s266 + $0x34] sm:$0xf]
    %v281 = vld [vmem:[%s266 + $0x38] sm:$0xf]
    %v282 = vld [vmem:[%s266 + $0x3c] sm:$0xf]
    %v299 = vunpack.c.l.b16 %v267
    %v300 = vunpack.c.l.b16 %v268
    %v301 = vunpack.c.l.b16 %v269
    %v302 = vunpack.c.l.b16 %v270
    %v303 = vunpack.c.l.b16 %v271
    %v304 = vunpack.c.l.b16 %v272
    %v305 = vunpack.c.l.b16 %v273
    %v306 = vunpack.c.l.b16 %v274
    %v307 = vunpack.c.l.b16 %v275
    %v308 = vunpack.c.l.b16 %v276
    %v309 = vunpack.c.l.b16 %v277
    %v310 = vunpack.c.l.b16 %v278
    %v311 = vunpack.c.l.b16 %v279
    %v312 = vunpack.c.l.b16 %v280
    %v313 = vunpack.c.l.b16 %v281
    %v314 = vunpack.c.l.b16 %v282
    %v315 = vpack.c.b16 %v300, %v299
    %v316 = vpack.c.b16 %v302, %v301
    %v317 = vpack.c.b16 %v304, %v303
    %v318 = vpack.c.b16 %v306, %v305
    %v319 = vpack.c.b16 %v308, %v307
    %v320 = vpack.c.b16 %v310, %v309
    %v321 = vpack.c.b16 %v312, %v311
    %v322 = vpack.c.b16 %v314, %v313
    %331 = vmatprep.subr.bf16.mxu0 0
    %332 = vmatpush1.bf16.msra.mxu0 %v315
    %333 = vmatprep.subr.bf16.mxu0 0
    %334 = vmatpush1.bf16.msra.mxu0 %v316
    %335 = vmatprep.subr.bf16.mxu0 0
    %336 = vmatpush1.bf16.msra.mxu0 %v317
    %337 = vmatprep.subr.bf16.mxu0 0
    %338 = vmatpush1.bf16.msra.mxu0 %v318
    %339 = vmatprep.subr.bf16.mxu0 0
    %340 = vmatpush1.bf16.msra.mxu0 %v319
    %341 = vmatprep.subr.bf16.mxu0 0
    %342 = vmatpush1.bf16.msra.mxu0 %v320
    %343 = vmatprep.subr.bf16.mxu0 0
    %344 = vmatpush1.bf16.msra.mxu0 %v321
    %345 = vmatprep.subr.bf16.mxu0 0
    %346 = vmatpush1.bf16.msra.mxu0 %v322
    %347 = vmatprep.subr.bf16.mxu0 0
    %348 = vmatpush1.bf16.msra.mxu0 0
    %349 = vmatprep.subr.bf16.mxu0 0
    %350 = vmatpush1.bf16.msra.mxu0 0
    %351 = vmatprep.subr.bf16.mxu0 0
    %352 = vmatpush1.bf16.msra.mxu0 0
    %353 = vmatprep.subr.bf16.mxu0 0
    %354 = vmatpush1.bf16.msra.mxu0 0
    %355 = vmatprep.subr.bf16.mxu0 0
    %356 = vmatpush1.bf16.msra.mxu0 0
    %357 = vmatprep.subr.bf16.mxu0 0
    %358 = vmatpush1.bf16.msra.mxu0 0
    %359 = vmatprep.subr.bf16.mxu0 0
    %360 = vmatpush1.bf16.msra.mxu0 0
    %361 = vmatprep.subr.bf16.mxu0 0
    %362 = vmatpush1.bf16.msra.mxu0 0
    %363 = vmatprep.mubr.bf16.mxu0 0
    %364 = vmatmul.mubr.bf16.gmra.mrb[0].mxu0 %v265
    %v365 = vpop.f32.mrb[0].mxu0
    %v366 = vadd.f32 0.0, %v365
    %v367 = vpop.f32.mrb[0].mxu0
    %v368 = vpop.f32.mrb[0].mxu0
    %v369 = vadd.f32 0.0, %v368
    %v370 = vpop.f32.mrb[0].mxu0
    %371 = vdwg.mxu0
    %v372 = vmax.f32 %v366, 0.0
    %v373 = vmax.f32 %v369, 0.0
    %v374 = vpack.c.bf16 %v373, %v372
    %s375 = scalar_lea.vmem [#allocation5], 192
    %v376 = vld [vmem:[%s375] sm:$0xf]
    %v377 = vld [vmem:[%s375 + $0x4] sm:$0xf]
    %v378 = vld [vmem:[%s375 + $0x8] sm:$0xf]
    %v379 = vld [vmem:[%s375 + $0xc] sm:$0xf]
    %v380 = vld [vmem:[%s375 + $0x10] sm:$0xf]
    %v381 = vld [vmem:[%s375 + $0x14] sm:$0xf]
    %v382 = vld [vmem:[%s375 + $0x18] sm:$0xf]
    %v383 = vld [vmem:[%s375 + $0x1c] sm:$0xf]
    %v384 = vld [vmem:[%s375 + $0x20] sm:$0xf]
    %v385 = vld [vmem:[%s375 + $0x24] sm:$0xf]
    %v386 = vld [vmem:[%s375 + $0x28] sm:$0xf]
    %v387 = vld [vmem:[%s375 + $0x2c] sm:$0xf]
    %v388 = vld [vmem:[%s375 + $0x30] sm:$0xf]
    %v389 = vld [vmem:[%s375 + $0x34] sm:$0xf]
    %v390 = vld [vmem:[%s375 + $0x38] sm:$0xf]
    %v391 = vld [vmem:[%s375 + $0x3c] sm:$0xf]
    %v408 = vunpack.c.l.b16 %v376
    %v409 = vunpack.c.l.b16 %v377
    %v410 = vunpack.c.l.b16 %v378
    %v411 = vunpack.c.l.b16 %v379
    %v412 = vunpack.c.l.b16 %v380
    %v413 = vunpack.c.l.b16 %v381
    %v414 = vunpack.c.l.b16 %v382
    %v415 = vunpack.c.l.b16 %v383
    %v416 = vunpack.c.l.b16 %v384
    %v417 = vunpack.c.l.b16 %v385
    %v418 = vunpack.c.l.b16 %v386
    %v419 = vunpack.c.l.b16 %v387
    %v420 = vunpack.c.l.b16 %v388
    %v421 = vunpack.c.l.b16 %v389
    %v422 = vunpack.c.l.b16 %v390
    %v423 = vunpack.c.l.b16 %v391
    %v424 = vpack.c.b16 %v409, %v408
    %v425 = vpack.c.b16 %v411, %v410
    %v426 = vpack.c.b16 %v413, %v412
    %v427 = vpack.c.b16 %v415, %v414
    %v428 = vpack.c.b16 %v417, %v416
    %v429 = vpack.c.b16 %v419, %v418
    %v430 = vpack.c.b16 %v421, %v420
    %v431 = vpack.c.b16 %v423, %v422
    %440 = vmatprep.subr.bf16.mxu0 0
    %441 = vmatpush1.bf16.msra.mxu0 %v424
    %442 = vmatprep.subr.bf16.mxu0 0
    %443 = vmatpush1.bf16.msra.mxu0 %v425
    %444 = vmatprep.subr.bf16.mxu0 0
    %445 = vmatpush1.bf16.msra.mxu0 %v426
    %446 = vmatprep.subr.bf16.mxu0 0
    %447 = vmatpush1.bf16.msra.mxu0 %v427
    %448 = vmatprep.subr.bf16.mxu0 0
    %449 = vmatpush1.bf16.msra.mxu0 %v428
    %450 = vmatprep.subr.bf16.mxu0 0
    %451 = vmatpush1.bf16.msra.mxu0 %v429
    %452 = vmatprep.subr.bf16.mxu0 0
    %453 = vmatpush1.bf16.msra.mxu0 %v430
    %454 = vmatprep.subr.bf16.mxu0 0
    %455 = vmatpush1.bf16.msra.mxu0 %v431
    %456 = vmatprep.subr.bf16.mxu0 0
    %457 = vmatpush1.bf16.msra.mxu0 0
    %458 = vmatprep.subr.bf16.mxu0 0
    %459 = vmatpush1.bf16.msra.mxu0 0
    %460 = vmatprep.subr.bf16.mxu0 0
    %461 = vmatpush1.bf16.msra.mxu0 0
    %462 = vmatprep.subr.bf16.mxu0 0
    %463 = vmatpush1.bf16.msra.mxu0 0
    %464 = vmatprep.subr.bf16.mxu0 0
    %465 = vmatpush1.bf16.msra.mxu0 0
    %466 = vmatprep.subr.bf16.mxu0 0
    %467 = vmatpush1.bf16.msra.mxu0 0
    %468 = vmatprep.subr.bf16.mxu0 0
    %469 = vmatpush1.bf16.msra.mxu0 0
    %470 = vmatprep.subr.bf16.mxu0 0
    %471 = vmatpush1.bf16.msra.mxu0 0
    %472 = vmatprep.mubr.bf16.mxu0 0
    %473 = vmatmul.mubr.bf16.gmra.mrb[0].mxu0 %v374
    %v474 = vpop.f32.mrb[0].mxu0
    %v475 = vadd.f32 0.0, %v474
    %v476 = vpop.f32.mrb[0].mxu0
    %v477 = vpop.f32.mrb[0].mxu0
    %v478 = vadd.f32 0.0, %v477
    %v479 = vpop.f32.mrb[0].mxu0
    %480 = vdwg.mxu0
    %v481 = vmax.f32 %v475, 0.0
    %v482 = vmax.f32 %v478, 0.0
    %v483 = vpack.c.bf16 %v482, %v481
    %s484 = scalar_lea.vmem [#allocation5], 256
    %v485 = vld [vmem:[%s484] sm:$0xf]
    %v486 = vld [vmem:[%s484 + $0x4] sm:$0xf]
    %v487 = vld [vmem:[%s484 + $0x8] sm:$0xf]
    %v488 = vld [vmem:[%s484 + $0xc] sm:$0xf]
    %v489 = vld [vmem:[%s484 + $0x10] sm:$0xf]
    %v490 = vld [vmem:[%s484 + $0x14] sm:$0xf]
    %v491 = vld [vmem:[%s484 + $0x18] sm:$0xf]
    %v492 = vld [vmem:[%s484 + $0x1c] sm:$0xf]
    %v493 = vld [vmem:[%s484 + $0x20] sm:$0xf]
    %v494 = vld [vmem:[%s484 + $0x24] sm:$0xf]
    %v495 = vld [vmem:[%s484 + $0x28] sm:$0xf]
    %v496 = vld [vmem:[%s484 + $0x2c] sm:$0xf]
    %v497 = vld [vmem:[%s484 + $0x30] sm:$0xf]
    %v498 = vld [vmem:[%s484 + $0x34] sm:$0xf]
    %v499 = vld [vmem:[%s484 + $0x38] sm:$0xf]
    %v500 = vld [vmem:[%s484 + $0x3c] sm:$0xf]
    %v517 = vunpack.c.l.b16 %v485
    %v518 = vunpack.c.l.b16 %v486
    %v519 = vunpack.c.l.b16 %v487
    %v520 = vunpack.c.l.b16 %v488
    %v521 = vunpack.c.l.b16 %v489
    %v522 = vunpack.c.l.b16 %v490
    %v523 = vunpack.c.l.b16 %v491
    %v524 = vunpack.c.l.b16 %v492
    %v525 = vunpack.c.l.b16 %v493
    %v526 = vunpack.c.l.b16 %v494
    %v527 = vunpack.c.l.b16 %v495
    %v528 = vunpack.c.l.b16 %v496
    %v529 = vunpack.c.l.b16 %v497
    %v530 = vunpack.c.l.b16 %v498
    %v531 = vunpack.c.l.b16 %v499
    %v532 = vunpack.c.l.b16 %v500
    %v533 = vpack.c.b16 %v518, %v517
    %v534 = vpack.c.b16 %v520, %v519
    %v535 = vpack.c.b16 %v522, %v521
    %v536 = vpack.c.b16 %v524, %v523
    %v537 = vpack.c.b16 %v526, %v525
    %v538 = vpack.c.b16 %v528, %v527
    %v539 = vpack.c.b16 %v530, %v529
    %v540 = vpack.c.b16 %v532, %v531
    %549 = vmatprep.subr.bf16.mxu0 0
    %550 = vmatpush1.bf16.msra.mxu0 %v533
    %551 = vmatprep.subr.bf16.mxu0 0
    %552 = vmatpush1.bf16.msra.mxu0 %v534
    %553 = vmatprep.subr.bf16.mxu0 0
    %554 = vmatpush1.bf16.msra.mxu0 %v535
    %555 = vmatprep.subr.bf16.mxu0 0
    %556 = vmatpush1.bf16.msra.mxu0 %v536
    %557 = vmatprep.subr.bf16.mxu0 0
    %558 = vmatpush1.bf16.msra.mxu0 %v537
    %559 = vmatprep.subr.bf16.mxu0 0
    %560 = vmatpush1.bf16.msra.mxu0 %v538
    %561 = vmatprep.subr.bf16.mxu0 0
    %562 = vmatpush1.bf16.msra.mxu0 %v539
    %563 = vmatprep.subr.bf16.mxu0 0
    %564 = vmatpush1.bf16.msra.mxu0 %v540
    %565 = vmatprep.subr.bf16.mxu0 0
    %566 = vmatpush1.bf16.msra.mxu0 0
    %567 = vmatprep.subr.bf16.mxu0 0
    %568 = vmatpush1.bf16.msra.mxu0 0
    %569 = vmatprep.subr.bf16.mxu0 0
    %570 = vmatpush1.bf16.msra.mxu0 0
    %571 = vmatprep.subr.bf16.mxu0 0
    %572 = vmatpush1.bf16.msra.mxu0 0
    %573 = vmatprep.subr.bf16.mxu0 0
    %574 = vmatpush1.bf16.msra.mxu0 0
    %575 = vmatprep.subr.bf16.mxu0 0
    %576 = vmatpush1.bf16.msra.mxu0 0
    %577 = vmatprep.subr.bf16.mxu0 0
    %578 = vmatpush1.bf16.msra.mxu0 0
    %579 = vmatprep.subr.bf16.mxu0 0
    %580 = vmatpush1.bf16.msra.mxu0 0
    %581 = vmatprep.mubr.bf16.mxu0 0
    %582 = vmatmul.mubr.bf16.gmra.mrb[0].mxu0 %v483
    %v583 = vpop.f32.mrb[0].mxu0
    %v584 = vadd.f32 0.0, %v583
    %v585 = vpop.f32.mrb[0].mxu0
    %v586 = vpop.f32.mrb[0].mxu0
    %v587 = vadd.f32 0.0, %v586
    %v588 = vpop.f32.mrb[0].mxu0
    %589 = vdwg.mxu0
    %v590 = vmax.f32 %v584, 0.0
    %v591 = vmax.f32 %v587, 0.0
    %v592 = vpack.c.bf16 %v591, %v590
    %s593 = scalar_lea.vmem [#allocation5], 320
    %v594 = vld [vmem:[%s593] sm:$0xf]
    %v595 = vld [vmem:[%s593 + $0x4] sm:$0xf]
    %v596 = vld [vmem:[%s593 + $0x8] sm:$0xf]
    %v597 = vld [vmem:[%s593 + $0xc] sm:$0xf]
    %v598 = vld [vmem:[%s593 + $0x10] sm:$0xf]
    %v599 = vld [vmem:[%s593 + $0x14] sm:$0xf]
    %v600 = vld [vmem:[%s593 + $0x18] sm:$0xf]
    %v601 = vld [vmem:[%s593 + $0x1c] sm:$0xf]
    %v602 = vld [vmem:[%s593 + $0x20] sm:$0xf]
    %v603 = vld [vmem:[%s593 + $0x24] sm:$0xf]
    %v604 = vld [vmem:[%s593 + $0x28] sm:$0xf]
    %v605 = vld [vmem:[%s593 + $0x2c] sm:$0xf]
    %v606 = vld [vmem:[%s593 + $0x30] sm:$0xf]
    %v607 = vld [vmem:[%s593 + $0x34] sm:$0xf]
    %v608 = vld [vmem:[%s593 + $0x38] sm:$0xf]
    %v609 = vld [vmem:[%s593 + $0x3c] sm:$0xf]
    %v626 = vunpack.c.l.b16 %v594
    %v627 = vunpack.c.l.b16 %v595
    %v628 = vunpack.c.l.b16 %v596
    %v629 = vunpack.c.l.b16 %v597
    %v630 = vunpack.c.l.b16 %v598
    %v631 = vunpack.c.l.b16 %v599
    %v632 = vunpack.c.l.b16 %v600
    %v633 = vunpack.c.l.b16 %v601
    %v634 = vunpack.c.l.b16 %v602
    %v635 = vunpack.c.l.b16 %v603
    %v636 = vunpack.c.l.b16 %v604
    %v637 = vunpack.c.l.b16 %v605
    %v638 = vunpack.c.l.b16 %v606
    %v639 = vunpack.c.l.b16 %v607
    %v640 = vunpack.c.l.b16 %v608
    %v641 = vunpack.c.l.b16 %v609
    %v642 = vpack.c.b16 %v627, %v626
    %v643 = vpack.c.b16 %v629, %v628
    %v644 = vpack.c.b16 %v631, %v630
    %v645 = vpack.c.b16 %v633, %v632
    %v646 = vpack.c.b16 %v635, %v634
    %v647 = vpack.c.b16 %v637, %v636
    %v648 = vpack.c.b16 %v639, %v638
    %v649 = vpack.c.b16 %v641, %v640
    %658 = vmatprep.subr.bf16.mxu0 0
    %659 = vmatpush1.bf16.msra.mxu0 %v642
    %660 = vmatprep.subr.bf16.mxu0 0
    %661 = vmatpush1.bf16.msra.mxu0 %v643
    %662 = vmatprep.subr.bf16.mxu0 0
    %663 = vmatpush1.bf16.msra.mxu0 %v644
    %664 = vmatprep.subr.bf16.mxu0 0
    %665 = vmatpush1.bf16.msra.mxu0 %v645
    %666 = vmatprep.subr.bf16.mxu0 0
    %667 = vmatpush1.bf16.msra.mxu0 %v646
    %668 = vmatprep.subr.bf16.mxu0 0
    %669 = vmatpush1.bf16.msra.mxu0 %v647
    %670 = vmatprep.subr.bf16.mxu0 0
    %671 = vmatpush1.bf16.msra.mxu0 %v648
    %672 = vmatprep.subr.bf16.mxu0 0
    %673 = vmatpush1.bf16.msra.mxu0 %v649
    %674 = vmatprep.subr.bf16.mxu0 0
    %675 = vmatpush1.bf16.msra.mxu0 0
    %676 = vmatprep.subr.bf16.mxu0 0
    %677 = vmatpush1.bf16.msra.mxu0 0
    %678 = vmatprep.subr.bf16.mxu0 0
    %679 = vmatpush1.bf16.msra.mxu0 0
    %680 = vmatprep.subr.bf16.mxu0 0
    %681 = vmatpush1.bf16.msra.mxu0 0
    %682 = vmatprep.subr.bf16.mxu0 0
    %683 = vmatpush1.bf16.msra.mxu0 0
    %684 = vmatprep.subr.bf16.mxu0 0
    %685 = vmatpush1.bf16.msra.mxu0 0
    %686 = vmatprep.subr.bf16.mxu0 0
    %687 = vmatpush1.bf16.msra.mxu0 0
    %688 = vmatprep.subr.bf16.mxu0 0
    %689 = vmatpush1.bf16.msra.mxu0 0
    %690 = vmatprep.mubr.bf16.mxu0 0
    %691 = vmatmul.mubr.bf16.gmra.mrb[0].mxu0 %v592
    %v692 = vpop.f32.mrb[0].mxu0
    %v693 = vadd.f32 0.0, %v692
    %v694 = vpop.f32.mrb[0].mxu0
    %v695 = vpop.f32.mrb[0].mxu0
    %v696 = vadd.f32 0.0, %v695
    %v697 = vpop.f32.mrb[0].mxu0
    %698 = vdwg.mxu0
    %699 = vst [vmem:[#allocation7] sm:$0xff] %v693
    %700 = vst [vmem:[#allocation7 + $0x8] sm:$0xff] %v696
    // Predicated region
    $region18: #{tpu_custom_call.1} parent=1 // pred_check
      _
    $region19: #{tpu_custom_call.1} parent=1 // pred_check_branch
      %702 = sbr.rel (0) target = $region21
    $region20: #{tpu_custom_call.1} parent=1 // pred_region
      %s704 = ssub.s32 256, 256
      %705 = vsyncadd [#allocation4], %s704
      %s706 = sshll.u32 [#allocation7], 4
      %s707 = int_to_ptr.vmem [resolvable:$true] %s706
      %712 = dma.vmem_to_hbm [thread:$0]  %s707, 256, %s2, [#allocation4], 128, 128, 8
    $region21: #{tpu_custom_call.1} parent=1 // pred_fallthru
      _
    // Predicated region
    $region22: #{tpu_custom_call.1} parent=1 // pred_check
      _
    $region23: #{tpu_custom_call.1} parent=1 // pred_check_branch
      %714 = sbr.rel (0) target = $region25
    $region24: #{tpu_custom_call.1} parent=1 // pred_region
      %715 = dma.done [#allocation4], 256
    $region25: #{tpu_custom_call.1} parent=1 // pred_fallthru
      _
    %716 = vsyncpa [#allocation3], 1
    %717 = vsyncpa [#allocation6], 1
    %718 = vsyncpa [#allocation4], 1

</llo_original>
